<compile_context>
chip_gen: v7x
topology: tpu7x:2x2x1
jax: 0.10.0
libtpu: 0.0.40
codegen_flags: <defaults>
</compile_context>

<pallas_src>
import jax
import jax.numpy as jnp
from jax import lax
from jax.experimental import pallas as pl
from jax.experimental.pallas import tpu as pltpu

INPUT_SIZE = 2
HIDDEN_SIZE = 64
LATENT_SIZE = 8


def _round_up(n, m):
    return ((n + m - 1) // m) * m


def encoder_kernel(x_ref, len_ref, w1_ref, b1_ref, w2_ref, b2_ref, out_ref):
    """One batch-block of the Encoder forward, batch on the lane axis.

    x_ref:   (T*D_in, BB) f32   -- x transposed so batch fills the 128 lanes
    len_ref: (1, BB)      int32 -- per-sequence (prefix-mask) lengths
    w1_ref:  (H, D_in) f32, b1_ref: (H, 1) f32
    w2_ref:  (L, H)    f32, b2_ref: (L, 1) f32
    out_ref: (L, BB)   f32      -- transposed output (lane-dense store)
    """
    H, D_in = w1_ref.shape
    TD, BB = x_ref.shape
    T = TD // D_in

    lens_i = len_ref[...]                     # (1, BB) int32
    lens_f = lens_i.astype(jnp.float32)       # (1, BB)
    b2 = b2_ref[...]                          # (L, 1)

    # Hoist the (tiny) layer-1 weight lane-broadcasts out of the timestep loop
    # (JAX does not CSE broadcast_in_dim; rebuilding them per t would push
    # repeated cross-lane work through the XLU).
    w1 = w1_ref[...]                          # (H, D_in)
    w1_bc = [jnp.broadcast_to(w1[:, d:d + 1], (H, BB)) for d in range(D_in)]
    b1_bc = jnp.broadcast_to(b1_ref[...], (H, BB))

    def timestep(t, acc):
        # Layer 1 as a D_in-term FMA on the VPU (D_in == 2), fused with ReLU,
        # the prefix mask and the sum over time: no (T, H, BB) hidden tensor
        # is ever materialized.
        xt = x_ref[pl.ds(t * D_in, D_in), :]            # (D_in, BB), lane-dense
        h_t = b1_bc
        for d in range(D_in):                           # static unroll, D_in tiny
            h_t = h_t + w1_bc[d] * xt[d].reshape(1, BB)
        h_t = jnp.maximum(h_t, 0.0)                     # ReLU
        m_t = (lens_i > t).astype(jnp.float32)          # (1, BB) prefix mask
        return acc + h_t * m_t

    acc = jnp.zeros((H, BB), jnp.float32)
    if T <= 32:
        for t in range(T):                              # static unroll (small T)
            acc = timestep(t, acc)
    else:
        acc = lax.fori_loop(0, T, timestep, acc, unroll=4)

    # Layer 2 once per sequence, transposed so N = BB fills the MXU lanes and
    # the result flows straight into the lane-dense store. The bias is folded
    # through the pooling.
    z = jnp.dot(w2_ref[...], acc, preferred_element_type=jnp.float32)  # (L, BB)
    z = z + b2 * lens_f

    # masked mean with torch's lengths.clamp(min=1) semantics
    out_ref[...] = z / jnp.maximum(lens_f, 1.0)


def encoder_forward(x, mask, w1, b1, w2, b2, block_b=None):
    """x: (B, T, D_in) f32, mask: (B, T) (or None) -> (B, latent) f32.

    NOTE: the mask is reduced to per-sequence int32 lengths and rebuilt
    in-kernel as a prefix mask (exactly what pad_sequence produces in the
    original training loop). Arbitrary non-prefix / soft masks would need a
    dense-mask path.
    """
    B, T, D_in = x.shape
    H = w1.shape[1]
    L = w2.shape[1]

    x = x.astype(jnp.float32)

    if mask is None:
        # torch branch: z.mean(dim=1)  ==  masked mean with lengths == T
        lens = jnp.full((1, B), T, dtype=jnp.int32)
    else:
        lens = jnp.rint(mask.astype(jnp.float32)).astype(jnp.int32)
        lens = lens.reshape(B, T).sum(axis=1).reshape(1, B)

    # Lane-dense batch blocks (multiples of 128), fat to amortize the per-step
    # pipeline overhead; split into >= 2 blocks for larger batches so both
    # v7x TensorCores get work along the "parallel" grid axis.
    if block_b is None:
        block_b = min(1024, _round_up(B, 128))
        if B >= 256 and pl.cdiv(B, block_b) < 2:
            block_b = max(128, _round_up(pl.cdiv(B, 2), 128))
    n_blocks = pl.cdiv(B, block_b)
    Bp = n_blocks * block_b

    # Batch onto the lane axis: (B, T, D) -> (T*D, B).
    xt = jnp.transpose(x, (1, 2, 0)).reshape(T * D_in, B)
    if Bp != B:
        # padded columns get length 0 -> output 0, sliced off below
        xt = jnp.pad(xt, ((0, 0), (0, Bp - B)))
        lens = jnp.pad(lens, ((0, 0), (0, Bp - B)))

    # kernel-side weight layouts
    w1k = jnp.asarray(w1, jnp.float32).T.reshape(H, D_in)   # (H, D_in)
    b1k = jnp.asarray(b1, jnp.float32).reshape(H, 1)        # (H, 1)
    w2k = jnp.asarray(w2, jnp.float32).T.reshape(L, H)      # (L, H)
    b2k = jnp.asarray(b2, jnp.float32).reshape(L, 1)        # (L, 1)

    out_t = pl.pallas_call(
        encoder_kernel,
        out_shape=jax.ShapeDtypeStruct((L, Bp), jnp.float32),
        grid_spec=pltpu.PrefetchScalarGridSpec(
            num_scalar_prefetch=0,
            grid=(n_blocks,),
            in_specs=[
                pl.BlockSpec((T * D_in, block_b), lambda b: (0, b)),  # x, lanes=batch
                pl.BlockSpec((1, block_b), lambda b: (0, b)),         # lengths
                pl.BlockSpec((H, D_in), lambda b: (0, 0)),            # W1^T (full)
                pl.BlockSpec((H, 1), lambda b: (0, 0)),               # b1 column
                pl.BlockSpec((L, H), lambda b: (0, 0)),               # W2^T (full)
                pl.BlockSpec((L, 1), lambda b: (0, 0)),               # b2 column
            ],
            out_specs=pl.BlockSpec((L, block_b), lambda b: (0, b)),   # lane-dense store
        ),
        compiler_params=pltpu.CompilerParams(
            dimension_semantics=("parallel",)),
    )(xt, lens, w1k, b1k, w2k, b2k)

    return out_t[:, :B].T                                    # (B, L)


def encoder_reference(x, mask, w1, b1, w2, b2):
    hp = jax.lax.Precision.HIGHEST
    h = jnp.maximum(jnp.einsum("btd,dh->bth", x, w1, precision=hp) + b1, 0.0)
    z = jnp.einsum("bth,hl->btl", h, w2, precision=hp) + b2
    if mask is None:
        return z.mean(axis=1)
    m = mask[..., None].astype(jnp.float32)
    summed = (z * m).sum(axis=1)
    lengths = m.sum(axis=1)
    return summed / jnp.maximum(lengths, 1.0)


if __name__ == "__main__":
    key = jax.random.PRNGKey(0)
    k_x, k_w1, k_b1, k_w2, k_b2 = jax.random.split(key, 5)

    B, T = 2, 8
    x = jax.random.normal(k_x, (B, T, INPUT_SIZE), dtype=jnp.float32)

    # variable-length mask (like pad_sequence masking): lengths 5 and 8
    lengths = jnp.array([5, 8], dtype=jnp.int32)
    mask = (jnp.arange(T)[None, :] < lengths[:, None]).astype(jnp.float32)  # (B, T)

    # deterministic parameter init (weights stored as (in, out))
    w1 = 0.1 * jax.random.normal(k_w1, (INPUT_SIZE, HIDDEN_SIZE), dtype=jnp.float32)
    b1 = 0.1 * jax.random.normal(k_b1, (HIDDEN_SIZE,), dtype=jnp.float32)
    w2 = 0.1 * jax.random.normal(k_w2, (HIDDEN_SIZE, LATENT_SIZE), dtype=jnp.float32)
    b2 = 0.1 * jax.random.normal(k_b2, (LATENT_SIZE,), dtype=jnp.float32)

    out = jax.block_until_ready(encoder_forward(x, mask, w1, b1, w2, b2))
    ref = encoder_reference(x, mask, w1, b1, w2, b2)
    assert out.shape == (B, LATENT_SIZE)
    assert jnp.allclose(out, ref, atol=1e-5, rtol=1e-5), "mismatch vs reference"

    # also exercise the mask=None branch (plain mean over time)
    out_none = jax.block_until_ready(encoder_forward(x, None, w1, b1, w2, b2))
    ref_none = encoder_reference(x, None, w1, b1, w2, b2)
    assert jnp.allclose(out_none, ref_none, atol=1e-5, rtol=1e-5)

    print("KERNEL_OK")
</pallas_src>

<mosaic_0001>
module attributes {stable_mosaic.version = 11 : i64} {
  func.func @encoder_kernel(%arg0: i32, %arg1: memref<16x128xf32, #tpu.memory_space<vmem>>, %arg2: memref<1x128xi32, #tpu.memory_space<vmem>>, %arg3: memref<64x2xf32, #tpu.memory_space<vmem>>, %arg4: memref<64x1xf32, #tpu.memory_space<vmem>>, %arg5: memref<8x64xf32, #tpu.memory_space<vmem>>, %arg6: memref<8x1xf32, #tpu.memory_space<vmem>>, %arg7: memref<8x128xf32, #tpu.memory_space<vmem>>) attributes {dimension_semantics = [#tpu.dimension_semantics<parallel>], iteration_bounds = array<i64: 1>, scalar_prefetch = 0 : i64, scratch_operands = 0 : i64, tpu.core_type = #tpu.core_type<tc>, window_params = [{transform_indices = @transform_0, window_bounds = array<i64: 16, 128>}, {transform_indices = @transform_1, window_bounds = array<i64: 1, 128>}, {pipeline_mode = #tpu.pipeline_mode<synchronous>, transform_indices = @transform_2, window_bounds = array<i64: 64, 2>}, {pipeline_mode = #tpu.pipeline_mode<synchronous>, transform_indices = @transform_3, window_bounds = array<i64: 64, 1>}, {pipeline_mode = #tpu.pipeline_mode<synchronous>, transform_indices = @transform_4, window_bounds = array<i64: 8, 64>}, {pipeline_mode = #tpu.pipeline_mode<synchronous>, transform_indices = @transform_5, window_bounds = array<i64: 8, 1>}, {transform_indices = @transform_6, window_bounds = array<i64: 8, 128>}]} {
    %c0 = arith.constant 0 : index
    %c0_0 = arith.constant 0 : index
    %0 = vector.load %arg2[%c0, %c0_0] : memref<1x128xi32, #tpu.memory_space<vmem>>, vector<1x128xi32>
    %1 = arith.sitofp %0 : vector<1x128xi32> to vector<1x128xf32>
    %c0_1 = arith.constant 0 : index
    %c0_2 = arith.constant 0 : index
    %2 = vector.load %arg6[%c0_1, %c0_2] : memref<8x1xf32, #tpu.memory_space<vmem>>, vector<8x1xf32>
    %c0_3 = arith.constant 0 : index
    %c0_4 = arith.constant 0 : index
    %3 = vector.load %arg3[%c0_3, %c0_4] : memref<64x2xf32, #tpu.memory_space<vmem>>, vector<64x2xf32>
    %4 = vector.extract_strided_slice %3 {offsets = [0, 0], sizes = [64, 1], strides = [1, 1]} : vector<64x2xf32> to vector<64x1xf32>
    %5 = vector.shape_cast %4 : vector<64x1xf32> to vector<64x1xf32>
    %6 = vector.broadcast %5 : vector<64x1xf32> to vector<64x128xf32>
    %7 = vector.extract_strided_slice %3 {offsets = [0, 1], sizes = [64, 1], strides = [1, 1]} : vector<64x2xf32> to vector<64x1xf32>
    %8 = vector.shape_cast %7 : vector<64x1xf32> to vector<64x1xf32>
    %9 = vector.broadcast %8 : vector<64x1xf32> to vector<64x128xf32>
    %c0_5 = arith.constant 0 : index
    %c0_6 = arith.constant 0 : index
    %10 = vector.load %arg4[%c0_5, %c0_6] : memref<64x1xf32, #tpu.memory_space<vmem>>, vector<64x1xf32>
    %11 = vector.shape_cast %10 : vector<64x1xf32> to vector<64x1xf32>
    %12 = vector.broadcast %11 : vector<64x1xf32> to vector<64x128xf32>
    %cst = arith.constant 0.000000e+00 : f32
    %13 = vector.broadcast %cst : f32 to vector<64x128xf32>
    %c0_7 = arith.constant 0 : index
    %c0_8 = arith.constant 0 : index
    %14 = vector.load %arg1[%c0_7, %c0_8] : memref<16x128xf32, #tpu.memory_space<vmem>>, vector<2x128xf32>
    %15 = vector.extract_strided_slice %14 {offsets = [0, 0], sizes = [1, 128], strides = [1, 1]} : vector<2x128xf32> to vector<1x128xf32>
    %16 = vector.shape_cast %15 : vector<1x128xf32> to vector<128xf32>
    %17 = vector.shape_cast %16 : vector<128xf32> to vector<1x128xf32>
    %18 = vector.broadcast %17 : vector<1x128xf32> to vector<64x128xf32>
    %19 = arith.mulf %6, %18 : vector<64x128xf32>
    %20 = arith.addf %12, %19 : vector<64x128xf32>
    %21 = vector.extract_strided_slice %14 {offsets = [1, 0], sizes = [1, 128], strides = [1, 1]} : vector<2x128xf32> to vector<1x128xf32>
    %22 = vector.shape_cast %21 : vector<1x128xf32> to vector<128xf32>
    %23 = vector.shape_cast %22 : vector<128xf32> to vector<1x128xf32>
    %24 = vector.broadcast %23 : vector<1x128xf32> to vector<64x128xf32>
    %25 = arith.mulf %9, %24 : vector<64x128xf32>
    %26 = arith.addf %20, %25 : vector<64x128xf32>
    %cst_9 = arith.constant 0.000000e+00 : f32
    %27 = vector.broadcast %cst_9 : f32 to vector<64x128xf32>
    %28 = arith.maximumf %26, %27 : vector<64x128xf32>
    %c0_i32 = arith.constant 0 : i32
    %29 = vector.broadcast %c0_i32 : i32 to vector<1x128xi32>
    %30 = arith.cmpi sgt, %0, %29 : vector<1x128xi32>
    %31 = arith.extui %30 : vector<1x128xi1> to vector<1x128xi32>
    %32 = arith.sitofp %31 : vector<1x128xi32> to vector<1x128xf32>
    %33 = vector.broadcast %32 : vector<1x128xf32> to vector<64x128xf32>
    %34 = arith.mulf %28, %33 : vector<64x128xf32>
    %35 = arith.addf %13, %34 : vector<64x128xf32>
    %c2 = arith.constant 2 : index
    %c0_10 = arith.constant 0 : index
    %36 = vector.load %arg1[%c2, %c0_10] : memref<16x128xf32, #tpu.memory_space<vmem>>, vector<2x128xf32>
    %37 = vector.extract_strided_slice %36 {offsets = [0, 0], sizes = [1, 128], strides = [1, 1]} : vector<2x128xf32> to vector<1x128xf32>
    %38 = vector.shape_cast %37 : vector<1x128xf32> to vector<128xf32>
    %39 = vector.shape_cast %38 : vector<128xf32> to vector<1x128xf32>
    %40 = vector.broadcast %39 : vector<1x128xf32> to vector<64x128xf32>
    %41 = arith.mulf %6, %40 : vector<64x128xf32>
    %42 = arith.addf %12, %41 : vector<64x128xf32>
    %43 = vector.extract_strided_slice %36 {offsets = [1, 0], sizes = [1, 128], strides = [1, 1]} : vector<2x128xf32> to vector<1x128xf32>
    %44 = vector.shape_cast %43 : vector<1x128xf32> to vector<128xf32>
    %45 = vector.shape_cast %44 : vector<128xf32> to vector<1x128xf32>
    %46 = vector.broadcast %45 : vector<1x128xf32> to vector<64x128xf32>
    %47 = arith.mulf %9, %46 : vector<64x128xf32>
    %48 = arith.addf %42, %47 : vector<64x128xf32>
    %cst_11 = arith.constant 0.000000e+00 : f32
    %49 = vector.broadcast %cst_11 : f32 to vector<64x128xf32>
    %50 = arith.maximumf %48, %49 : vector<64x128xf32>
    %c1_i32 = arith.constant 1 : i32
    %51 = vector.broadcast %c1_i32 : i32 to vector<1x128xi32>
    %52 = arith.cmpi sgt, %0, %51 : vector<1x128xi32>
    %53 = arith.extui %52 : vector<1x128xi1> to vector<1x128xi32>
    %54 = arith.sitofp %53 : vector<1x128xi32> to vector<1x128xf32>
    %55 = vector.broadcast %54 : vector<1x128xf32> to vector<64x128xf32>
    %56 = arith.mulf %50, %55 : vector<64x128xf32>
    %57 = arith.addf %35, %56 : vector<64x128xf32>
    %c4 = arith.constant 4 : index
    %c0_12 = arith.constant 0 : index
    %58 = vector.load %arg1[%c4, %c0_12] : memref<16x128xf32, #tpu.memory_space<vmem>>, vector<2x128xf32>
    %59 = vector.extract_strided_slice %58 {offsets = [0, 0], sizes = [1, 128], strides = [1, 1]} : vector<2x128xf32> to vector<1x128xf32>
    %60 = vector.shape_cast %59 : vector<1x128xf32> to vector<128xf32>
    %61 = vector.shape_cast %60 : vector<128xf32> to vector<1x128xf32>
    %62 = vector.broadcast %61 : vector<1x128xf32> to vector<64x128xf32>
    %63 = arith.mulf %6, %62 : vector<64x128xf32>
    %64 = arith.addf %12, %63 : vector<64x128xf32>
    %65 = vector.extract_strided_slice %58 {offsets = [1, 0], sizes = [1, 128], strides = [1, 1]} : vector<2x128xf32> to vector<1x128xf32>
    %66 = vector.shape_cast %65 : vector<1x128xf32> to vector<128xf32>
    %67 = vector.shape_cast %66 : vector<128xf32> to vector<1x128xf32>
    %68 = vector.broadcast %67 : vector<1x128xf32> to vector<64x128xf32>
    %69 = arith.mulf %9, %68 : vector<64x128xf32>
    %70 = arith.addf %64, %69 : vector<64x128xf32>
    %cst_13 = arith.constant 0.000000e+00 : f32
    %71 = vector.broadcast %cst_13 : f32 to vector<64x128xf32>
    %72 = arith.maximumf %70, %71 : vector<64x128xf32>
    %c2_i32 = arith.constant 2 : i32
    %73 = vector.broadcast %c2_i32 : i32 to vector<1x128xi32>
    %74 = arith.cmpi sgt, %0, %73 : vector<1x128xi32>
    %75 = arith.extui %74 : vector<1x128xi1> to vector<1x128xi32>
    %76 = arith.sitofp %75 : vector<1x128xi32> to vector<1x128xf32>
    %77 = vector.broadcast %76 : vector<1x128xf32> to vector<64x128xf32>
    %78 = arith.mulf %72, %77 : vector<64x128xf32>
    %79 = arith.addf %57, %78 : vector<64x128xf32>
    %c6 = arith.constant 6 : index
    %c0_14 = arith.constant 0 : index
    %80 = vector.load %arg1[%c6, %c0_14] : memref<16x128xf32, #tpu.memory_space<vmem>>, vector<2x128xf32>
    %81 = vector.extract_strided_slice %80 {offsets = [0, 0], sizes = [1, 128], strides = [1, 1]} : vector<2x128xf32> to vector<1x128xf32>
    %82 = vector.shape_cast %81 : vector<1x128xf32> to vector<128xf32>
    %83 = vector.shape_cast %82 : vector<128xf32> to vector<1x128xf32>
    %84 = vector.broadcast %83 : vector<1x128xf32> to vector<64x128xf32>
    %85 = arith.mulf %6, %84 : vector<64x128xf32>
    %86 = arith.addf %12, %85 : vector<64x128xf32>
    %87 = vector.extract_strided_slice %80 {offsets = [1, 0], sizes = [1, 128], strides = [1, 1]} : vector<2x128xf32> to vector<1x128xf32>
    %88 = vector.shape_cast %87 : vector<1x128xf32> to vector<128xf32>
    %89 = vector.shape_cast %88 : vector<128xf32> to vector<1x128xf32>
    %90 = vector.broadcast %89 : vector<1x128xf32> to vector<64x128xf32>
    %91 = arith.mulf %9, %90 : vector<64x128xf32>
    %92 = arith.addf %86, %91 : vector<64x128xf32>
    %cst_15 = arith.constant 0.000000e+00 : f32
    %93 = vector.broadcast %cst_15 : f32 to vector<64x128xf32>
    %94 = arith.maximumf %92, %93 : vector<64x128xf32>
    %c3_i32 = arith.constant 3 : i32
    %95 = vector.broadcast %c3_i32 : i32 to vector<1x128xi32>
    %96 = arith.cmpi sgt, %0, %95 : vector<1x128xi32>
    %97 = arith.extui %96 : vector<1x128xi1> to vector<1x128xi32>
    %98 = arith.sitofp %97 : vector<1x128xi32> to vector<1x128xf32>
    %99 = vector.broadcast %98 : vector<1x128xf32> to vector<64x128xf32>
    %100 = arith.mulf %94, %99 : vector<64x128xf32>
    %101 = arith.addf %79, %100 : vector<64x128xf32>
    %c8 = arith.constant 8 : index
    %c0_16 = arith.constant 0 : index
    %102 = vector.load %arg1[%c8, %c0_16] : memref<16x128xf32, #tpu.memory_space<vmem>>, vector<2x128xf32>
    %103 = vector.extract_strided_slice %102 {offsets = [0, 0], sizes = [1, 128], strides = [1, 1]} : vector<2x128xf32> to vector<1x128xf32>
    %104 = vector.shape_cast %103 : vector<1x128xf32> to vector<128xf32>
    %105 = vector.shape_cast %104 : vector<128xf32> to vector<1x128xf32>
    %106 = vector.broadcast %105 : vector<1x128xf32> to vector<64x128xf32>
    %107 = arith.mulf %6, %106 : vector<64x128xf32>
    %108 = arith.addf %12, %107 : vector<64x128xf32>
    %109 = vector.extract_strided_slice %102 {offsets = [1, 0], sizes = [1, 128], strides = [1, 1]} : vector<2x128xf32> to vector<1x128xf32>
    %110 = vector.shape_cast %109 : vector<1x128xf32> to vector<128xf32>
    %111 = vector.shape_cast %110 : vector<128xf32> to vector<1x128xf32>
    %112 = vector.broadcast %111 : vector<1x128xf32> to vector<64x128xf32>
    %113 = arith.mulf %9, %112 : vector<64x128xf32>
    %114 = arith.addf %108, %113 : vector<64x128xf32>
    %cst_17 = arith.constant 0.000000e+00 : f32
    %115 = vector.broadcast %cst_17 : f32 to vector<64x128xf32>
    %116 = arith.maximumf %114, %115 : vector<64x128xf32>
    %c4_i32 = arith.constant 4 : i32
    %117 = vector.broadcast %c4_i32 : i32 to vector<1x128xi32>
    %118 = arith.cmpi sgt, %0, %117 : vector<1x128xi32>
    %119 = arith.extui %118 : vector<1x128xi1> to vector<1x128xi32>
    %120 = arith.sitofp %119 : vector<1x128xi32> to vector<1x128xf32>
    %121 = vector.broadcast %120 : vector<1x128xf32> to vector<64x128xf32>
    %122 = arith.mulf %116, %121 : vector<64x128xf32>
    %123 = arith.addf %101, %122 : vector<64x128xf32>
    %c10 = arith.constant 10 : index
    %c0_18 = arith.constant 0 : index
    %124 = vector.load %arg1[%c10, %c0_18] : memref<16x128xf32, #tpu.memory_space<vmem>>, vector<2x128xf32>
    %125 = vector.extract_strided_slice %124 {offsets = [0, 0], sizes = [1, 128], strides = [1, 1]} : vector<2x128xf32> to vector<1x128xf32>
    %126 = vector.shape_cast %125 : vector<1x128xf32> to vector<128xf32>
    %127 = vector.shape_cast %126 : vector<128xf32> to vector<1x128xf32>
    %128 = vector.broadcast %127 : vector<1x128xf32> to vector<64x128xf32>
    %129 = arith.mulf %6, %128 : vector<64x128xf32>
    %130 = arith.addf %12, %129 : vector<64x128xf32>
    %131 = vector.extract_strided_slice %124 {offsets = [1, 0], sizes = [1, 128], strides = [1, 1]} : vector<2x128xf32> to vector<1x128xf32>
    %132 = vector.shape_cast %131 : vector<1x128xf32> to vector<128xf32>
    %133 = vector.shape_cast %132 : vector<128xf32> to vector<1x128xf32>
    %134 = vector.broadcast %133 : vector<1x128xf32> to vector<64x128xf32>
    %135 = arith.mulf %9, %134 : vector<64x128xf32>
    %136 = arith.addf %130, %135 : vector<64x128xf32>
    %cst_19 = arith.constant 0.000000e+00 : f32
    %137 = vector.broadcast %cst_19 : f32 to vector<64x128xf32>
    %138 = arith.maximumf %136, %137 : vector<64x128xf32>
    %c5_i32 = arith.constant 5 : i32
    %139 = vector.broadcast %c5_i32 : i32 to vector<1x128xi32>
    %140 = arith.cmpi sgt, %0, %139 : vector<1x128xi32>
    %141 = arith.extui %140 : vector<1x128xi1> to vector<1x128xi32>
    %142 = arith.sitofp %141 : vector<1x128xi32> to vector<1x128xf32>
    %143 = vector.broadcast %142 : vector<1x128xf32> to vector<64x128xf32>
    %144 = arith.mulf %138, %143 : vector<64x128xf32>
    %145 = arith.addf %123, %144 : vector<64x128xf32>
    %c12 = arith.constant 12 : index
    %c0_20 = arith.constant 0 : index
    %146 = vector.load %arg1[%c12, %c0_20] : memref<16x128xf32, #tpu.memory_space<vmem>>, vector<2x128xf32>
    %147 = vector.extract_strided_slice %146 {offsets = [0, 0], sizes = [1, 128], strides = [1, 1]} : vector<2x128xf32> to vector<1x128xf32>
    %148 = vector.shape_cast %147 : vector<1x128xf32> to vector<128xf32>
    %149 = vector.shape_cast %148 : vector<128xf32> to vector<1x128xf32>
    %150 = vector.broadcast %149 : vector<1x128xf32> to vector<64x128xf32>
    %151 = arith.mulf %6, %150 : vector<64x128xf32>
    %152 = arith.addf %12, %151 : vector<64x128xf32>
    %153 = vector.extract_strided_slice %146 {offsets = [1, 0], sizes = [1, 128], strides = [1, 1]} : vector<2x128xf32> to vector<1x128xf32>
    %154 = vector.shape_cast %153 : vector<1x128xf32> to vector<128xf32>
    %155 = vector.shape_cast %154 : vector<128xf32> to vector<1x128xf32>
    %156 = vector.broadcast %155 : vector<1x128xf32> to vector<64x128xf32>
    %157 = arith.mulf %9, %156 : vector<64x128xf32>
    %158 = arith.addf %152, %157 : vector<64x128xf32>
    %cst_21 = arith.constant 0.000000e+00 : f32
    %159 = vector.broadcast %cst_21 : f32 to vector<64x128xf32>
    %160 = arith.maximumf %158, %159 : vector<64x128xf32>
    %c6_i32 = arith.constant 6 : i32
    %161 = vector.broadcast %c6_i32 : i32 to vector<1x128xi32>
    %162 = arith.cmpi sgt, %0, %161 : vector<1x128xi32>
    %163 = arith.extui %162 : vector<1x128xi1> to vector<1x128xi32>
    %164 = arith.sitofp %163 : vector<1x128xi32> to vector<1x128xf32>
    %165 = vector.broadcast %164 : vector<1x128xf32> to vector<64x128xf32>
    %166 = arith.mulf %160, %165 : vector<64x128xf32>
    %167 = arith.addf %145, %166 : vector<64x128xf32>
    %c14 = arith.constant 14 : index
    %c0_22 = arith.constant 0 : index
    %168 = vector.load %arg1[%c14, %c0_22] : memref<16x128xf32, #tpu.memory_space<vmem>>, vector<2x128xf32>
    %169 = vector.extract_strided_slice %168 {offsets = [0, 0], sizes = [1, 128], strides = [1, 1]} : vector<2x128xf32> to vector<1x128xf32>
    %170 = vector.shape_cast %169 : vector<1x128xf32> to vector<128xf32>
    %171 = vector.shape_cast %170 : vector<128xf32> to vector<1x128xf32>
    %172 = vector.broadcast %171 : vector<1x128xf32> to vector<64x128xf32>
    %173 = arith.mulf %6, %172 : vector<64x128xf32>
    %174 = arith.addf %12, %173 : vector<64x128xf32>
    %175 = vector.extract_strided_slice %168 {offsets = [1, 0], sizes = [1, 128], strides = [1, 1]} : vector<2x128xf32> to vector<1x128xf32>
    %176 = vector.shape_cast %175 : vector<1x128xf32> to vector<128xf32>
    %177 = vector.shape_cast %176 : vector<128xf32> to vector<1x128xf32>
    %178 = vector.broadcast %177 : vector<1x128xf32> to vector<64x128xf32>
    %179 = arith.mulf %9, %178 : vector<64x128xf32>
    %180 = arith.addf %174, %179 : vector<64x128xf32>
    %cst_23 = arith.constant 0.000000e+00 : f32
    %181 = vector.broadcast %cst_23 : f32 to vector<64x128xf32>
    %182 = arith.maximumf %180, %181 : vector<64x128xf32>
    %c7_i32 = arith.constant 7 : i32
    %183 = vector.broadcast %c7_i32 : i32 to vector<1x128xi32>
    %184 = arith.cmpi sgt, %0, %183 : vector<1x128xi32>
    %185 = arith.extui %184 : vector<1x128xi1> to vector<1x128xi32>
    %186 = arith.sitofp %185 : vector<1x128xi32> to vector<1x128xf32>
    %187 = vector.broadcast %186 : vector<1x128xf32> to vector<64x128xf32>
    %188 = arith.mulf %182, %187 : vector<64x128xf32>
    %189 = arith.addf %167, %188 : vector<64x128xf32>
    %c0_24 = arith.constant 0 : index
    %c0_25 = arith.constant 0 : index
    %190 = vector.load %arg5[%c0_24, %c0_25] : memref<8x64xf32, #tpu.memory_space<vmem>>, vector<8x64xf32>
    %cst_26 = arith.constant dense<0.000000e+00> : vector<8x128xf32>
    %191 = tpu.matmul %190, %189, %cst_26 {dimension_numbers = #tpu.dot_dimension_numbers<[1], [0], [0], [1], [0, 0, 1, 1], [], []>} : vector<8x64xf32>, vector<64x128xf32>, vector<8x128xf32> -> vector<8x128xf32>
    %192 = vector.broadcast %2 : vector<8x1xf32> to vector<8x128xf32>
    %193 = vector.broadcast %1 : vector<1x128xf32> to vector<8x128xf32>
    %194 = arith.mulf %192, %193 : vector<8x128xf32>
    %195 = arith.addf %191, %194 : vector<8x128xf32>
    %cst_27 = arith.constant 1.000000e+00 : f32
    %196 = vector.broadcast %cst_27 : f32 to vector<1x128xf32>
    %197 = arith.maximumf %1, %196 : vector<1x128xf32>
    %198 = vector.broadcast %197 : vector<1x128xf32> to vector<8x128xf32>
    %199 = arith.divf %195, %198 : vector<8x128xf32>
    %c0_28 = arith.constant 0 : index
    %c0_29 = arith.constant 0 : index
    %200 = vector.load %arg7[%c0_28, %c0_29] : memref<8x128xf32, #tpu.memory_space<vmem>>, vector<8x128xf32>
    tpu.vector_store %arg7[%c0_28, %c0_29], %199 {strides = array<i32>} : memref<8x128xf32, #tpu.memory_space<vmem>>, vector<8x128xf32>,
    return
  }
  func.func @transform_0(%arg0: i32) -> (i32, i32) {
    %c0_i32 = arith.constant 0 : i32
    %c0_i32_0 = arith.constant 0 : i32
    return %c0_i32, %arg0 : i32, i32
  }
  func.func @transform_1(%arg0: i32) -> (i32, i32) {
    %c0_i32 = arith.constant 0 : i32
    %c0_i32_0 = arith.constant 0 : i32
    return %c0_i32, %arg0 : i32, i32
  }
  func.func @transform_2(%arg0: i32) -> (i32, i32) {
    %c0_i32 = arith.constant 0 : i32
    %c0_i32_0 = arith.constant 0 : i32
    %c0_i32_1 = arith.constant 0 : i32
    return %c0_i32, %c0_i32_0 : i32, i32
  }
  func.func @transform_3(%arg0: i32) -> (i32, i32) {
    %c0_i32 = arith.constant 0 : i32
    %c0_i32_0 = arith.constant 0 : i32
    %c0_i32_1 = arith.constant 0 : i32
    return %c0_i32, %c0_i32_0 : i32, i32
  }
  func.func @transform_4(%arg0: i32) -> (i32, i32) {
    %c0_i32 = arith.constant 0 : i32
    %c0_i32_0 = arith.constant 0 : i32
    %c0_i32_1 = arith.constant 0 : i32
    return %c0_i32, %c0_i32_0 : i32, i32
  }
  func.func @transform_5(%arg0: i32) -> (i32, i32) {
    %c0_i32 = arith.constant 0 : i32
    %c0_i32_0 = arith.constant 0 : i32
    %c0_i32_1 = arith.constant 0 : i32
    return %c0_i32, %c0_i32_0 : i32, i32
  }
  func.func @transform_6(%arg0: i32) -> (i32, i32) {
    %c0_i32 = arith.constant 0 : i32
    %c0_i32_0 = arith.constant 0 : i32
    return %c0_i32, %arg0 : i32, i32
  }
}

</mosaic_0001>

<llo_original>
// kernel: tpu_custom_call.1
$region0: #{tpu_custom_call.1}
  #allocation0 [shape = 'u32[]', space=smem, size = 0x4, offset = 0x4, fixed_abs, tag = 'smem constant byte address 0x4 - core index']
  #allocation1 [shape = 'u32[144,128]{1,0:T(1,128)}', space=vmem, size = 0x12000, scoped, tag = 'internal scratch']
  %s0 = inlined_call_operand.vmem [shape: f32[16,128], index: 0, kind: input, shape index: {}]
  %s1 = inlined_call_operand.vmem [shape: s32[1,128], index: 1, kind: input, shape index: {}]
  %s2 = inlined_call_operand.vmem [shape: f32[64,2], index: 2, kind: input, shape index: {}]
  %s3 = inlined_call_operand.vmem [shape: f32[64,1], index: 3, kind: input, shape index: {}]
  %s4 = inlined_call_operand.vmem [shape: f32[8,64], index: 4, kind: input, shape index: {}]
  %s5 = inlined_call_operand.vmem [shape: f32[8,1], index: 5, kind: input, shape index: {}]
  %s6 = inlined_call_operand.hbm [shape: f32[8,128], index: 6, kind: output, shape index: {}]
  %s7 = sld [smem:[#allocation0]]
  $region34: #{tpu_custom_call.1} parent=0
    _
  %s9 = ssub.s32 1, %s7
  %s10 = scalar_select 0, %s9, %s7
  $region1: #{tpu_custom_call.1} parent=0
    #allocation2 [shape = 'u8[4096]{0}', space=vmem, size = 0x1000, scoped, tag = 'output window, operand 0, single buffered']
    #allocation3 [shape = 's32[1]{0}', space=sflag, size = 0x4, scoped, tag = 'scoped memory for tpu_custom_call.1']
    %11 = vsyncpa [#allocation3], 0
    // Predicated region
    $region2: #{tpu_custom_call.1} parent=1 // pred_check
      _
    $region3: #{tpu_custom_call.1} parent=1 // pred_check_branch
      %13 = sbr.rel (0) target = $region5
    $region4: #{tpu_custom_call.1} parent=1 // pred_region
      _
    $region5: #{tpu_custom_call.1} parent=1 // pred_fallthru
      _
    // Predicated region
    $region6: #{tpu_custom_call.1} parent=1 // pred_check
      _
    $region7: #{tpu_custom_call.1} parent=1 // pred_check_branch
      %15 = sbr.rel (0) target = $region9
    $region8: #{tpu_custom_call.1} parent=1 // pred_region
      _
    $region9: #{tpu_custom_call.1} parent=1 // pred_fallthru
      _
    // Predicated region
    $region10: #{tpu_custom_call.1} parent=1 // pred_check
      _
    $region11: #{tpu_custom_call.1} parent=1 // pred_check_branch
      %17 = sbr.rel (0) target = $region13
    $region12: #{tpu_custom_call.1} parent=1 // pred_region
      _
    $region13: #{tpu_custom_call.1} parent=1 // pred_fallthru
      _
    // Predicated region
    $region14: #{tpu_custom_call.1} parent=1 // pred_check
      _
    $region15: #{tpu_custom_call.1} parent=1 // pred_check_branch
      %19 = sbr.rel (0) target = $region17
    $region16: #{tpu_custom_call.1} parent=1 // pred_region
      _
    $region17: #{tpu_custom_call.1} parent=1 // pred_fallthru
      _
    // Predicated region
    $region18: #{tpu_custom_call.1} parent=1 // pred_check
      _
    $region19: #{tpu_custom_call.1} parent=1 // pred_check_branch
      %21 = sbr.rel (0) target = $region21
    $region20: #{tpu_custom_call.1} parent=1 // pred_region
      _
    $region21: #{tpu_custom_call.1} parent=1 // pred_fallthru
      _
    // Predicated region
    $region22: #{tpu_custom_call.1} parent=1 // pred_check
      _
    $region23: #{tpu_custom_call.1} parent=1 // pred_check_branch
      %23 = sbr.rel (0) target = $region25
    $region24: #{tpu_custom_call.1} parent=1 // pred_region
      _
    $region25: #{tpu_custom_call.1} parent=1 // pred_fallthru
      _
    %v24 = vld [vmem:[%s1] sm:$0x1]
    %v25 = vcvt.s32.f32 %v24
    %v26 = vld [vmem:[%s5] sm:$0xff]
    %v27 = vld [vmem:[%s2] sm:$0xff]
    %v28 = vld [vmem:[%s2 + $0x8] sm:$0xff]
    %v29 = vld [vmem:[%s2 + $0x10] sm:$0xff]
    %v30 = vld [vmem:[%s2 + $0x18] sm:$0xff]
    %v31 = vld [vmem:[%s2 + $0x20] sm:$0xff]
    %v32 = vld [vmem:[%s2 + $0x28] sm:$0xff]
    %v33 = vld [vmem:[%s2 + $0x30] sm:$0xff]
    %v34 = vld [vmem:[%s2 + $0x38] sm:$0xff]
    %36 = vset.pattern.permute.xlu0 0
    %37 = vperm.xlu0 %36, %v27
    %v38 = vpop.permute.xlu0 %37
    %41 = vset.pattern.permute.xlu0 0
    %42 = vperm.xlu0 %41, %v28
    %v43 = vpop.permute.xlu0 %42
    %46 = vset.pattern.permute.xlu0 0
    %47 = vperm.xlu0 %46, %v29
    %v48 = vpop.permute.xlu0 %47
    %51 = vset.pattern.permute.xlu0 0
    %52 = vperm.xlu0 %51, %v30
    %v53 = vpop.permute.xlu0 %52
    %56 = vset.pattern.permute.xlu0 0
    %57 = vperm.xlu0 %56, %v31
    %v58 = vpop.permute.xlu0 %57
    %61 = vset.pattern.permute.xlu0 0
    %62 = vperm.xlu0 %61, %v32
    %v63 = vpop.permute.xlu0 %62
    %66 = vset.pattern.permute.xlu0 0
    %67 = vperm.xlu0 %66, %v33
    %v68 = vpop.permute.xlu0 %67
    %71 = vset.pattern.permute.xlu0 0
    %72 = vperm.xlu0 %71, %v34
    %v73 = vpop.permute.xlu0 %72
    %75 = vset.pattern.permute.xlu0 1
    %76 = vperm.xlu0 %75, %v27
    %v77 = vpop.permute.xlu0 %76
    %79 = vset.pattern.permute.xlu0 1
    %80 = vperm.xlu0 %79, %v28
    %v81 = vpop.permute.xlu0 %80
    %83 = vset.pattern.permute.xlu0 1
    %84 = vperm.xlu0 %83, %v29
    %v85 = vpop.permute.xlu0 %84
    %87 = vset.pattern.permute.xlu0 1
    %88 = vperm.xlu0 %87, %v30
    %v89 = vpop.permute.xlu0 %88
    %91 = vset.pattern.permute.xlu0 1
    %92 = vperm.xlu0 %91, %v31
    %v93 = vpop.permute.xlu0 %92
    %95 = vset.pattern.permute.xlu0 1
    %96 = vperm.xlu0 %95, %v32
    %v97 = vpop.permute.xlu0 %96
    %99 = vset.pattern.permute.xlu0 1
    %100 = vperm.xlu0 %99, %v33
    %v101 = vpop.permute.xlu0 %100
    %103 = vset.pattern.permute.xlu0 1
    %104 = vperm.xlu0 %103, %v34
    %v105 = vpop.permute.xlu0 %104
    %v107 = vld [vmem:[%s3] sm:$0xff]
    %v108 = vld [vmem:[%s3 + $0x8] sm:$0xff]
    %v109 = vld [vmem:[%s3 + $0x10] sm:$0xff]
    %v110 = vld [vmem:[%s3 + $0x18] sm:$0xff]
    %v111 = vld [vmem:[%s3 + $0x20] sm:$0xff]
    %v112 = vld [vmem:[%s3 + $0x28] sm:$0xff]
    %v113 = vld [vmem:[%s3 + $0x30] sm:$0xff]
    %v114 = vld [vmem:[%s3 + $0x38] sm:$0xff]
    %116 = vset.pattern.permute.xlu0 0
    %117 = vperm.xlu0 %116, %v107
    %v118 = vpop.permute.xlu0 %117
    %121 = vset.pattern.permute.xlu0 0
    %122 = vperm.xlu0 %121, %v108
    %v123 = vpop.permute.xlu0 %122
    %126 = vset.pattern.permute.xlu0 0
    %127 = vperm.xlu0 %126, %v109
    %v128 = vpop.permute.xlu0 %127
    %131 = vset.pattern.permute.xlu0 0
    %132 = vperm.xlu0 %131, %v110
    %v133 = vpop.permute.xlu0 %132
    %136 = vset.pattern.permute.xlu0 0
    %137 = vperm.xlu0 %136, %v111
    %v138 = vpop.permute.xlu0 %137
    %141 = vset.pattern.permute.xlu0 0
    %142 = vperm.xlu0 %141, %v112
    %v143 = vpop.permute.xlu0 %142
    %146 = vset.pattern.permute.xlu0 0
    %147 = vperm.xlu0 %146, %v113
    %v148 = vpop.permute.xlu0 %147
    %151 = vset.pattern.permute.xlu0 0
    %152 = vperm.xlu0 %151, %v114
    %v153 = vpop.permute.xlu0 %152
    %v155 = vld [vmem:[%s0] sm:$0x3]
    %v156 = vlaneseq
    %v157 = vshrl.u32 %v156, 7
    %v158 = vsub.s32 0, %v157
    %v159 = vrot.slane %v155, %v158
    %v160 = vmul.f32 %v38, %v159
    %v161 = vmul.f32 %v43, %v159
    %v162 = vmul.f32 %v48, %v159
    %v163 = vmul.f32 %v53, %v159
    %v164 = vmul.f32 %v58, %v159
    %v165 = vmul.f32 %v63, %v159
    %v166 = vmul.f32 %v68, %v159
    %v167 = vmul.f32 %v73, %v159
    %v168 = vadd.f32 %v118, %v160
    %v169 = vadd.f32 %v123, %v161
    %v170 = vadd.f32 %v128, %v162
    %v171 = vadd.f32 %v133, %v163
    %v172 = vadd.f32 %v138, %v164
    %v173 = vadd.f32 %v143, %v165
    %v174 = vadd.f32 %v148, %v166
    %v175 = vadd.f32 %v153, %v167
    %v176 = vlaneseq
    %v177 = vshrl.u32 %v176, 7
    %v178 = vsub.s32 1, %v177
    %v179 = vrot.slane %v155, %v178
    %v180 = vmul.f32 %v77, %v179
    %v181 = vmul.f32 %v81, %v179
    %v182 = vmul.f32 %v85, %v179
    %v183 = vmul.f32 %v89, %v179
    %v184 = vmul.f32 %v93, %v179
    %v185 = vmul.f32 %v97, %v179
    %v186 = vmul.f32 %v101, %v179
    %v187 = vmul.f32 %v105, %v179
    %v188 = vadd.f32 %v168, %v180
    %v189 = vadd.f32 %v169, %v181
    %v190 = vadd.f32 %v170, %v182
    %v191 = vadd.f32 %v171, %v183
    %v192 = vadd.f32 %v172, %v184
    %v193 = vadd.f32 %v173, %v185
    %v194 = vadd.f32 %v174, %v186
    %v195 = vadd.f32 %v175, %v187
    %v196 = vmax.f32 %v188, 0.0
    %v197 = vmax.f32 %v189, 0.0
    %v198 = vmax.f32 %v190, 0.0
    %v199 = vmax.f32 %v191, 0.0
    %v200 = vmax.f32 %v192, 0.0
    %v201 = vmax.f32 %v193, 0.0
    %v202 = vmax.f32 %v194, 0.0
    %v203 = vmax.f32 %v195, 0.0
    %vm204 = vcmp.gt.s32.totalorder %v24, 0
    %v205 = vsel %vm204, 1, 0
    %v206 = vcvt.s32.f32 %v205
    %v208 = vlaneseq
    %v209 = vshrl.u32 %v208, 7
    %v210 = vsub.s32 0, %v209
    %v211 = vrot.slane %v206, %v210
    %v213 = vmul.f32 %v196, %v211
    %v214 = vmul.f32 %v197, %v211
    %v215 = vmul.f32 %v198, %v211
    %v216 = vmul.f32 %v199, %v211
    %v217 = vmul.f32 %v200, %v211
    %v218 = vmul.f32 %v201, %v211
    %v219 = vmul.f32 %v202, %v211
    %v220 = vmul.f32 %v203, %v211
    %v221 = vadd.f32 %v213, 0.0
    %v222 = vadd.f32 %v214, 0.0
    %v223 = vadd.f32 %v215, 0.0
    %v224 = vadd.f32 %v216, 0.0
    %v225 = vadd.f32 %v217, 0.0
    %v226 = vadd.f32 %v218, 0.0
    %v227 = vadd.f32 %v219, 0.0
    %v228 = vadd.f32 %v220, 0.0
    %v229 = vld [vmem:[%s0 + $0x2] sm:$0x3]
    %v230 = vlaneseq
    %v231 = vshrl.u32 %v230, 7
    %v232 = vsub.s32 0, %v231
    %v233 = vrot.slane %v229, %v232
    %v234 = vmul.f32 %v38, %v233
    %v235 = vmul.f32 %v43, %v233
    %v236 = vmul.f32 %v48, %v233
    %v237 = vmul.f32 %v53, %v233
    %v238 = vmul.f32 %v58, %v233
    %v239 = vmul.f32 %v63, %v233
    %v240 = vmul.f32 %v68, %v233
    %v241 = vmul.f32 %v73, %v233
    %v242 = vadd.f32 %v118, %v234
    %v243 = vadd.f32 %v123, %v235
    %v244 = vadd.f32 %v128, %v236
    %v245 = vadd.f32 %v133, %v237
    %v246 = vadd.f32 %v138, %v238
    %v247 = vadd.f32 %v143, %v239
    %v248 = vadd.f32 %v148, %v240
    %v249 = vadd.f32 %v153, %v241
    %v250 = vlaneseq
    %v251 = vshrl.u32 %v250, 7
    %v252 = vsub.s32 1, %v251
    %v253 = vrot.slane %v229, %v252
    %v254 = vmul.f32 %v77, %v253
    %v255 = vmul.f32 %v81, %v253
    %v256 = vmul.f32 %v85, %v253
    %v257 = vmul.f32 %v89, %v253
    %v258 = vmul.f32 %v93, %v253
    %v259 = vmul.f32 %v97, %v253
    %v260 = vmul.f32 %v101, %v253
    %v261 = vmul.f32 %v105, %v253
    %v262 = vadd.f32 %v242, %v254
    %v263 = vadd.f32 %v243, %v255
    %v264 = vadd.f32 %v244, %v256
    %v265 = vadd.f32 %v245, %v257
    %v266 = vadd.f32 %v246, %v258
    %v267 = vadd.f32 %v247, %v259
    %v268 = vadd.f32 %v248, %v260
    %v269 = vadd.f32 %v249, %v261
    %v270 = vmax.f32 %v262, 0.0
    %v271 = vmax.f32 %v263, 0.0
    %v272 = vmax.f32 %v264, 0.0
    %v273 = vmax.f32 %v265, 0.0
    %v274 = vmax.f32 %v266, 0.0
    %v275 = vmax.f32 %v267, 0.0
    %v276 = vmax.f32 %v268, 0.0
    %v277 = vmax.f32 %v269, 0.0
    %vm278 = vcmp.gt.s32.totalorder %v24, 1
    %v279 = vsel %vm278, 1, 0
    %v280 = vcvt.s32.f32 %v279
    %v282 = vlaneseq
    %v283 = vshrl.u32 %v282, 7
    %v284 = vsub.s32 0, %v283
    %v285 = vrot.slane %v280, %v284
    %v287 = vmul.f32 %v270, %v285
    %v288 = vmul.f32 %v271, %v285
    %v289 = vmul.f32 %v272, %v285
    %v290 = vmul.f32 %v273, %v285
    %v291 = vmul.f32 %v274, %v285
    %v292 = vmul.f32 %v275, %v285
    %v293 = vmul.f32 %v276, %v285
    %v294 = vmul.f32 %v277, %v285
    %v295 = vadd.f32 %v221, %v287
    %v296 = vadd.f32 %v222, %v288
    %v297 = vadd.f32 %v223, %v289
    %v298 = vadd.f32 %v224, %v290
    %v299 = vadd.f32 %v225, %v291
    %v300 = vadd.f32 %v226, %v292
    %v301 = vadd.f32 %v227, %v293
    %v302 = vadd.f32 %v228, %v294
    %v303 = vld [vmem:[%s0 + $0x4] sm:$0x3]
    %v304 = vlaneseq
    %v305 = vshrl.u32 %v304, 7
    %v306 = vsub.s32 0, %v305
    %v307 = vrot.slane %v303, %v306
    %v308 = vmul.f32 %v38, %v307
    %v309 = vmul.f32 %v43, %v307
    %v310 = vmul.f32 %v48, %v307
    %v311 = vmul.f32 %v53, %v307
    %v312 = vmul.f32 %v58, %v307
    %v313 = vmul.f32 %v63, %v307
    %v314 = vmul.f32 %v68, %v307
    %v315 = vmul.f32 %v73, %v307
    %v316 = vadd.f32 %v118, %v308
    %v317 = vadd.f32 %v123, %v309
    %v318 = vadd.f32 %v128, %v310
    %v319 = vadd.f32 %v133, %v311
    %v320 = vadd.f32 %v138, %v312
    %v321 = vadd.f32 %v143, %v313
    %v322 = vadd.f32 %v148, %v314
    %v323 = vadd.f32 %v153, %v315
    %v324 = vlaneseq
    %v325 = vshrl.u32 %v324, 7
    %v326 = vsub.s32 1, %v325
    %v327 = vrot.slane %v303, %v326
    %v328 = vmul.f32 %v77, %v327
    %v329 = vmul.f32 %v81, %v327
    %v330 = vmul.f32 %v85, %v327
    %v331 = vmul.f32 %v89, %v327
    %v332 = vmul.f32 %v93, %v327
    %v333 = vmul.f32 %v97, %v327
    %v334 = vmul.f32 %v101, %v327
    %v335 = vmul.f32 %v105, %v327
    %v336 = vadd.f32 %v316, %v328
    %v337 = vadd.f32 %v317, %v329
    %v338 = vadd.f32 %v318, %v330
    %v339 = vadd.f32 %v319, %v331
    %v340 = vadd.f32 %v320, %v332
    %v341 = vadd.f32 %v321, %v333
    %v342 = vadd.f32 %v322, %v334
    %v343 = vadd.f32 %v323, %v335
    %v344 = vmax.f32 %v336, 0.0
    %v345 = vmax.f32 %v337, 0.0
    %v346 = vmax.f32 %v338, 0.0
    %v347 = vmax.f32 %v339, 0.0
    %v348 = vmax.f32 %v340, 0.0
    %v349 = vmax.f32 %v341, 0.0
    %v350 = vmax.f32 %v342, 0.0
    %v351 = vmax.f32 %v343, 0.0
    %vm352 = vcmp.gt.s32.totalorder %v24, 2
    %v353 = vsel %vm352, 1, 0
    %v354 = vcvt.s32.f32 %v353
    %v356 = vlaneseq
    %v357 = vshrl.u32 %v356, 7
    %v358 = vsub.s32 0, %v357
    %v359 = vrot.slane %v354, %v358
    %v361 = vmul.f32 %v344, %v359
    %v362 = vmul.f32 %v345, %v359
    %v363 = vmul.f32 %v346, %v359
    %v364 = vmul.f32 %v347, %v359
    %v365 = vmul.f32 %v348, %v359
    %v366 = vmul.f32 %v349, %v359
    %v367 = vmul.f32 %v350, %v359
    %v368 = vmul.f32 %v351, %v359
    %v369 = vadd.f32 %v295, %v361
    %v370 = vadd.f32 %v296, %v362
    %v371 = vadd.f32 %v297, %v363
    %v372 = vadd.f32 %v298, %v364
    %v373 = vadd.f32 %v299, %v365
    %v374 = vadd.f32 %v300, %v366
    %v375 = vadd.f32 %v301, %v367
    %v376 = vadd.f32 %v302, %v368
    %v377 = vld [vmem:[%s0 + $0x6] sm:$0x3]
    %v378 = vlaneseq
    %v379 = vshrl.u32 %v378, 7
    %v380 = vsub.s32 0, %v379
    %v381 = vrot.slane %v377, %v380
    %v382 = vmul.f32 %v38, %v381
    %v383 = vmul.f32 %v43, %v381
    %v384 = vmul.f32 %v48, %v381
    %v385 = vmul.f32 %v53, %v381
    %v386 = vmul.f32 %v58, %v381
    %v387 = vmul.f32 %v63, %v381
    %v388 = vmul.f32 %v68, %v381
    %v389 = vmul.f32 %v73, %v381
    %v390 = vadd.f32 %v118, %v382
    %v391 = vadd.f32 %v123, %v383
    %v392 = vadd.f32 %v128, %v384
    %v393 = vadd.f32 %v133, %v385
    %v394 = vadd.f32 %v138, %v386
    %v395 = vadd.f32 %v143, %v387
    %v396 = vadd.f32 %v148, %v388
    %v397 = vadd.f32 %v153, %v389
    %v398 = vlaneseq
    %v399 = vshrl.u32 %v398, 7
    %v400 = vsub.s32 1, %v399
    %v401 = vrot.slane %v377, %v400
    %v402 = vmul.f32 %v77, %v401
    %v403 = vmul.f32 %v81, %v401
    %v404 = vmul.f32 %v85, %v401
    %v405 = vmul.f32 %v89, %v401
    %v406 = vmul.f32 %v93, %v401
    %v407 = vmul.f32 %v97, %v401
    %v408 = vmul.f32 %v101, %v401
    %v409 = vmul.f32 %v105, %v401
    %v410 = vadd.f32 %v390, %v402
    %v411 = vadd.f32 %v391, %v403
    %v412 = vadd.f32 %v392, %v404
    %v413 = vadd.f32 %v393, %v405
    %v414 = vadd.f32 %v394, %v406
    %v415 = vadd.f32 %v395, %v407
    %v416 = vadd.f32 %v396, %v408
    %v417 = vadd.f32 %v397, %v409
    %v418 = vmax.f32 %v410, 0.0
    %v419 = vmax.f32 %v411, 0.0
    %v420 = vmax.f32 %v412, 0.0
    %v421 = vmax.f32 %v413, 0.0
    %v422 = vmax.f32 %v414, 0.0
    %v423 = vmax.f32 %v415, 0.0
    %v424 = vmax.f32 %v416, 0.0
    %v425 = vmax.f32 %v417, 0.0
    %vm426 = vcmp.gt.s32.totalorder %v24, 3
    %v427 = vsel %vm426, 1, 0
    %v428 = vcvt.s32.f32 %v427
    %v430 = vlaneseq
    %v431 = vshrl.u32 %v430, 7
    %v432 = vsub.s32 0, %v431
    %v433 = vrot.slane %v428, %v432
    %v435 = vmul.f32 %v418, %v433
    %v436 = vmul.f32 %v419, %v433
    %v437 = vmul.f32 %v420, %v433
    %v438 = vmul.f32 %v421, %v433
    %v439 = vmul.f32 %v422, %v433
    %v440 = vmul.f32 %v423, %v433
    %v441 = vmul.f32 %v424, %v433
    %v442 = vmul.f32 %v425, %v433
    %v443 = vadd.f32 %v369, %v435
    %v444 = vadd.f32 %v370, %v436
    %v445 = vadd.f32 %v371, %v437
    %v446 = vadd.f32 %v372, %v438
    %v447 = vadd.f32 %v373, %v439
    %v448 = vadd.f32 %v374, %v440
    %v449 = vadd.f32 %v375, %v441
    %v450 = vadd.f32 %v376, %v442
    %v451 = vld [vmem:[%s0 + $0x8] sm:$0x3]
    %v452 = vlaneseq
    %v453 = vshrl.u32 %v452, 7
    %v454 = vsub.s32 0, %v453
    %v455 = vrot.slane %v451, %v454
    %v456 = vmul.f32 %v38, %v455
    %v457 = vmul.f32 %v43, %v455
    %v458 = vmul.f32 %v48, %v455
    %v459 = vmul.f32 %v53, %v455
    %v460 = vmul.f32 %v58, %v455
    %v461 = vmul.f32 %v63, %v455
    %v462 = vmul.f32 %v68, %v455
    %v463 = vmul.f32 %v73, %v455
    %v464 = vadd.f32 %v118, %v456
    %v465 = vadd.f32 %v123, %v457
    %v466 = vadd.f32 %v128, %v458
    %v467 = vadd.f32 %v133, %v459
    %v468 = vadd.f32 %v138, %v460
    %v469 = vadd.f32 %v143, %v461
    %v470 = vadd.f32 %v148, %v462
    %v471 = vadd.f32 %v153, %v463
    %v472 = vlaneseq
    %v473 = vshrl.u32 %v472, 7
    %v474 = vsub.s32 1, %v473
    %v475 = vrot.slane %v451, %v474
    %v476 = vmul.f32 %v77, %v475
    %v477 = vmul.f32 %v81, %v475
    %v478 = vmul.f32 %v85, %v475
    %v479 = vmul.f32 %v89, %v475
    %v480 = vmul.f32 %v93, %v475
    %v481 = vmul.f32 %v97, %v475
    %v482 = vmul.f32 %v101, %v475
    %v483 = vmul.f32 %v105, %v475
    %v484 = vadd.f32 %v464, %v476
    %v485 = vadd.f32 %v465, %v477
    %v486 = vadd.f32 %v466, %v478
    %v487 = vadd.f32 %v467, %v479
    %v488 = vadd.f32 %v468, %v480
    %v489 = vadd.f32 %v469, %v481
    %v490 = vadd.f32 %v470, %v482
    %v491 = vadd.f32 %v471, %v483
    %v492 = vmax.f32 %v484, 0.0
    %v493 = vmax.f32 %v485, 0.0
    %v494 = vmax.f32 %v486, 0.0
    %v495 = vmax.f32 %v487, 0.0
    %v496 = vmax.f32 %v488, 0.0
    %v497 = vmax.f32 %v489, 0.0
    %v498 = vmax.f32 %v490, 0.0
    %v499 = vmax.f32 %v491, 0.0
    %vm500 = vcmp.gt.s32.totalorder %v24, 4
    %v501 = vsel %vm500, 1, 0
    %v502 = vcvt.s32.f32 %v501
    %v504 = vlaneseq
    %v505 = vshrl.u32 %v504, 7
    %v506 = vsub.s32 0, %v505
    %v507 = vrot.slane %v502, %v506
    %v509 = vmul.f32 %v492, %v507
    %v510 = vmul.f32 %v493, %v507
    %v511 = vmul.f32 %v494, %v507
    %v512 = vmul.f32 %v495, %v507
    %v513 = vmul.f32 %v496, %v507
    %v514 = vmul.f32 %v497, %v507
    %v515 = vmul.f32 %v498, %v507
    %v516 = vmul.f32 %v499, %v507
    %v517 = vadd.f32 %v443, %v509
    %v518 = vadd.f32 %v444, %v510
    %v519 = vadd.f32 %v445, %v511
    %v520 = vadd.f32 %v446, %v512
    %v521 = vadd.f32 %v447, %v513
    %v522 = vadd.f32 %v448, %v514
    %v523 = vadd.f32 %v449, %v515
    %v524 = vadd.f32 %v450, %v516
    %v525 = vld [vmem:[%s0 + $0xa] sm:$0x3]
    %v526 = vlaneseq
    %v527 = vshrl.u32 %v526, 7
    %v528 = vsub.s32 0, %v527
    %v529 = vrot.slane %v525, %v528
    %v530 = vmul.f32 %v38, %v529
    %v531 = vmul.f32 %v43, %v529
    %v532 = vmul.f32 %v48, %v529
    %v533 = vmul.f32 %v53, %v529
    %v534 = vmul.f32 %v58, %v529
    %v535 = vmul.f32 %v63, %v529
    %v536 = vmul.f32 %v68, %v529
    %v537 = vmul.f32 %v73, %v529
    %v538 = vadd.f32 %v118, %v530
    %v539 = vadd.f32 %v123, %v531
    %v540 = vadd.f32 %v128, %v532
    %v541 = vadd.f32 %v133, %v533
    %v542 = vadd.f32 %v138, %v534
    %v543 = vadd.f32 %v143, %v535
    %v544 = vadd.f32 %v148, %v536
    %v545 = vadd.f32 %v153, %v537
    %v546 = vlaneseq
    %v547 = vshrl.u32 %v546, 7
    %v548 = vsub.s32 1, %v547
    %v549 = vrot.slane %v525, %v548
    %v550 = vmul.f32 %v77, %v549
    %v551 = vmul.f32 %v81, %v549
    %v552 = vmul.f32 %v85, %v549
    %v553 = vmul.f32 %v89, %v549
    %v554 = vmul.f32 %v93, %v549
    %v555 = vmul.f32 %v97, %v549
    %v556 = vmul.f32 %v101, %v549
    %v557 = vmul.f32 %v105, %v549
    %v558 = vadd.f32 %v538, %v550
    %v559 = vadd.f32 %v539, %v551
    %v560 = vadd.f32 %v540, %v552
    %v561 = vadd.f32 %v541, %v553
    %v562 = vadd.f32 %v542, %v554
    %v563 = vadd.f32 %v543, %v555
    %v564 = vadd.f32 %v544, %v556
    %v565 = vadd.f32 %v545, %v557
    %v566 = vmax.f32 %v558, 0.0
    %v567 = vmax.f32 %v559, 0.0
    %v568 = vmax.f32 %v560, 0.0
    %v569 = vmax.f32 %v561, 0.0
    %v570 = vmax.f32 %v562, 0.0
    %v571 = vmax.f32 %v563, 0.0
    %v572 = vmax.f32 %v564, 0.0
    %v573 = vmax.f32 %v565, 0.0
    %vm574 = vcmp.gt.s32.totalorder %v24, 5
    %v575 = vsel %vm574, 1, 0
    %v576 = vcvt.s32.f32 %v575
    %v578 = vlaneseq
    %v579 = vshrl.u32 %v578, 7
    %v580 = vsub.s32 0, %v579
    %v581 = vrot.slane %v576, %v580
    %v583 = vmul.f32 %v566, %v581
    %v584 = vmul.f32 %v567, %v581
    %v585 = vmul.f32 %v568, %v581
    %v586 = vmul.f32 %v569, %v581
    %v587 = vmul.f32 %v570, %v581
    %v588 = vmul.f32 %v571, %v581
    %v589 = vmul.f32 %v572, %v581
    %v590 = vmul.f32 %v573, %v581
    %v591 = vadd.f32 %v517, %v583
    %v592 = vadd.f32 %v518, %v584
    %v593 = vadd.f32 %v519, %v585
    %v594 = vadd.f32 %v520, %v586
    %v595 = vadd.f32 %v521, %v587
    %v596 = vadd.f32 %v522, %v588
    %v597 = vadd.f32 %v523, %v589
    %v598 = vadd.f32 %v524, %v590
    %v599 = vld [vmem:[%s0 + $0xc] sm:$0x3]
    %v600 = vlaneseq
    %v601 = vshrl.u32 %v600, 7
    %v602 = vsub.s32 0, %v601
    %v603 = vrot.slane %v599, %v602
    %v604 = vmul.f32 %v38, %v603
    %v605 = vmul.f32 %v43, %v603
    %v606 = vmul.f32 %v48, %v603
    %v607 = vmul.f32 %v53, %v603
    %v608 = vmul.f32 %v58, %v603
    %v609 = vmul.f32 %v63, %v603
    %v610 = vmul.f32 %v68, %v603
    %v611 = vmul.f32 %v73, %v603
    %v612 = vadd.f32 %v118, %v604
    %v613 = vadd.f32 %v123, %v605
    %v614 = vadd.f32 %v128, %v606
    %v615 = vadd.f32 %v133, %v607
    %v616 = vadd.f32 %v138, %v608
    %v617 = vadd.f32 %v143, %v609
    %v618 = vadd.f32 %v148, %v610
    %v619 = vadd.f32 %v153, %v611
    %v620 = vlaneseq
    %v621 = vshrl.u32 %v620, 7
    %v622 = vsub.s32 1, %v621
    %v623 = vrot.slane %v599, %v622
    %v624 = vmul.f32 %v77, %v623
    %v625 = vmul.f32 %v81, %v623
    %v626 = vmul.f32 %v85, %v623
    %v627 = vmul.f32 %v89, %v623
    %v628 = vmul.f32 %v93, %v623
    %v629 = vmul.f32 %v97, %v623
    %v630 = vmul.f32 %v101, %v623
    %v631 = vmul.f32 %v105, %v623
    %v632 = vadd.f32 %v612, %v624
    %v633 = vadd.f32 %v613, %v625
    %v634 = vadd.f32 %v614, %v626
    %v635 = vadd.f32 %v615, %v627
    %v636 = vadd.f32 %v616, %v628
    %v637 = vadd.f32 %v617, %v629
    %v638 = vadd.f32 %v618, %v630
    %v639 = vadd.f32 %v619, %v631
    %v640 = vmax.f32 %v632, 0.0
    %v641 = vmax.f32 %v633, 0.0
    %v642 = vmax.f32 %v634, 0.0
    %v643 = vmax.f32 %v635, 0.0
    %v644 = vmax.f32 %v636, 0.0
    %v645 = vmax.f32 %v637, 0.0
    %v646 = vmax.f32 %v638, 0.0
    %v647 = vmax.f32 %v639, 0.0
    %vm648 = vcmp.gt.s32.totalorder %v24, 6
    %v649 = vsel %vm648, 1, 0
    %v650 = vcvt.s32.f32 %v649
    %v652 = vlaneseq
    %v653 = vshrl.u32 %v652, 7
    %v654 = vsub.s32 0, %v653
    %v655 = vrot.slane %v650, %v654
    %v657 = vmul.f32 %v640, %v655
    %v658 = vmul.f32 %v641, %v655
    %v659 = vmul.f32 %v642, %v655
    %v660 = vmul.f32 %v643, %v655
    %v661 = vmul.f32 %v644, %v655
    %v662 = vmul.f32 %v645, %v655
    %v663 = vmul.f32 %v646, %v655
    %v664 = vmul.f32 %v647, %v655
    %v665 = vadd.f32 %v591, %v657
    %v666 = vadd.f32 %v592, %v658
    %v667 = vadd.f32 %v593, %v659
    %v668 = vadd.f32 %v594, %v660
    %v669 = vadd.f32 %v595, %v661
    %v670 = vadd.f32 %v596, %v662
    %v671 = vadd.f32 %v597, %v663
    %v672 = vadd.f32 %v598, %v664
    %v673 = vld [vmem:[%s0 + $0xe] sm:$0x3]
    %v674 = vlaneseq
    %v675 = vshrl.u32 %v674, 7
    %v676 = vsub.s32 0, %v675
    %v677 = vrot.slane %v673, %v676
    %v678 = vmul.f32 %v38, %v677
    %v679 = vmul.f32 %v43, %v677
    %v680 = vmul.f32 %v48, %v677
    %v681 = vmul.f32 %v53, %v677
    %v682 = vmul.f32 %v58, %v677
    %v683 = vmul.f32 %v63, %v677
    %v684 = vmul.f32 %v68, %v677
    %v685 = vmul.f32 %v73, %v677
    %v686 = vadd.f32 %v118, %v678
    %v687 = vadd.f32 %v123, %v679
    %v688 = vadd.f32 %v128, %v680
    %v689 = vadd.f32 %v133, %v681
    %v690 = vadd.f32 %v138, %v682
    %v691 = vadd.f32 %v143, %v683
    %v692 = vadd.f32 %v148, %v684
    %v693 = vadd.f32 %v153, %v685
    %v694 = vlaneseq
    %v695 = vshrl.u32 %v694, 7
    %v696 = vsub.s32 1, %v695
    %v697 = vrot.slane %v673, %v696
    %v698 = vmul.f32 %v77, %v697
    %v699 = vmul.f32 %v81, %v697
    %v700 = vmul.f32 %v85, %v697
    %v701 = vmul.f32 %v89, %v697
    %v702 = vmul.f32 %v93, %v697
    %v703 = vmul.f32 %v97, %v697
    %v704 = vmul.f32 %v101, %v697
    %v705 = vmul.f32 %v105, %v697
    %v706 = vadd.f32 %v686, %v698
    %v707 = vadd.f32 %v687, %v699
    %v708 = vadd.f32 %v688, %v700
    %v709 = vadd.f32 %v689, %v701
    %v710 = vadd.f32 %v690, %v702
    %v711 = vadd.f32 %v691, %v703
    %v712 = vadd.f32 %v692, %v704
    %v713 = vadd.f32 %v693, %v705
    %v714 = vmax.f32 %v706, 0.0
    %v715 = vmax.f32 %v707, 0.0
    %v716 = vmax.f32 %v708, 0.0
    %v717 = vmax.f32 %v709, 0.0
    %v718 = vmax.f32 %v710, 0.0
    %v719 = vmax.f32 %v711, 0.0
    %v720 = vmax.f32 %v712, 0.0
    %v721 = vmax.f32 %v713, 0.0
    %vm722 = vcmp.gt.s32.totalorder %v24, 7
    %v723 = vsel %vm722, 1, 0
    %v724 = vcvt.s32.f32 %v723
    %v726 = vlaneseq
    %v727 = vshrl.u32 %v726, 7
    %v728 = vsub.s32 0, %v727
    %v729 = vrot.slane %v724, %v728
    %v731 = vmul.f32 %v714, %v729
    %v732 = vmul.f32 %v715, %v729
    %v733 = vmul.f32 %v716, %v729
    %v734 = vmul.f32 %v717, %v729
    %v735 = vmul.f32 %v718, %v729
    %v736 = vmul.f32 %v719, %v729
    %v737 = vmul.f32 %v720, %v729
    %v738 = vmul.f32 %v721, %v729
    %v739 = vadd.f32 %v665, %v731
    %v740 = vadd.f32 %v666, %v732
    %v741 = vadd.f32 %v667, %v733
    %v742 = vadd.f32 %v668, %v734
    %v743 = vadd.f32 %v669, %v735
    %v744 = vadd.f32 %v670, %v736
    %v745 = vadd.f32 %v671, %v737
    %v746 = vadd.f32 %v672, %v738
    %v747 = vld [vmem:[%s4] sm:$0xff]
    %749 = vset.pattern.permute.xlu0 0
    %750 = vperm.xlu0 %749, %v26
    %v751 = vpop.permute.xlu0 %750
    %v754 = vlaneseq
    %v755 = vshrl.u32 %v754, 7
    %v756 = vsub.s32 0, %v755
    %v757 = vrot.slane %v25, %v756
    %v759 = vmul.f32 %v751, %v757
    %vm760 = vcmask 523264
    %v762 = vsel %vm760, %v747, 0
    %764 = vmatprep.subr.mxu0 0.0
    %765 = vmatpush1.msra.mxu0 %v739
    %766 = vmatprep.subr.mxu0 0.0
    %767 = vmatpush1.msra.mxu0 %v740
    %768 = vmatprep.subr.mxu0 0.0
    %769 = vmatpush1.msra.mxu0 %v741
    %770 = vmatprep.subr.mxu0 0.0
    %771 = vmatpush1.msra.mxu0 %v742
    %772 = vmatprep.subr.mxu0 0.0
    %773 = vmatpush1.msra.mxu0 %v743
    %774 = vmatprep.subr.mxu0 0.0
    %775 = vmatpush1.msra.mxu0 %v744
    %776 = vmatprep.subr.mxu0 0.0
    %777 = vmatpush1.msra.mxu0 %v745
    %778 = vmatprep.subr.mxu0 0.0
    %779 = vmatpush1.msra.mxu0 %v746
    %780 = vmatprep.subr.mxu0 0.0
    %781 = vmatpush1.msra.mxu0 0.0
    %782 = vmatprep.subr.mxu0 0.0
    %783 = vmatpush1.msra.mxu0 0.0
    %784 = vmatprep.subr.mxu0 0.0
    %785 = vmatpush1.msra.mxu0 0.0
    %786 = vmatprep.subr.mxu0 0.0
    %787 = vmatpush1.msra.mxu0 0.0
    %788 = vmatprep.subr.mxu0 0.0
    %789 = vmatpush1.msra.mxu0 0.0
    %790 = vmatprep.subr.mxu0 0.0
    %791 = vmatpush1.msra.mxu0 0.0
    %792 = vmatprep.subr.mxu0 0.0
    %793 = vmatpush1.msra.mxu0 0.0
    %794 = vmatprep.subr.mxu0 0.0
    %795 = vmatpush1.msra.mxu0 0.0
    %796 = vmatprep.subr.mxu0 0.0
    %797 = vmatpush1.msra.mxu0 0.0
    %798 = vmatprep.subr.mxu0 0.0
    %799 = vmatpush1.msra.mxu0 0.0
    %800 = vmatprep.subr.mxu0 0.0
    %801 = vmatpush1.msra.mxu0 0.0
    %802 = vmatprep.subr.mxu0 0.0
    %803 = vmatpush1.msra.mxu0 0.0
    %804 = vmatprep.subr.mxu0 0.0
    %805 = vmatpush1.msra.mxu0 0.0
    %806 = vmatprep.subr.mxu0 0.0
    %807 = vmatpush1.msra.mxu0 0.0
    %808 = vmatprep.subr.mxu0 0.0
    %809 = vmatpush1.msra.mxu0 0.0
    %810 = vmatprep.subr.mxu0 0.0
    %811 = vmatpush1.msra.mxu0 0.0
    %812 = vmatprep.subr.mxu0 0.0
    %813 = vmatpush1.msra.mxu0 0.0
    %814 = vmatprep.subr.mxu0 0.0
    %815 = vmatpush1.msra.mxu0 0.0
    %816 = vmatprep.subr.mxu0 0.0
    %817 = vmatpush1.msra.mxu0 0.0
    %818 = vmatprep.subr.mxu0 0.0
    %819 = vmatpush1.msra.mxu0 0.0
    %820 = vmatprep.subr.mxu0 0.0
    %821 = vmatpush1.msra.mxu0 0.0
    %822 = vmatprep.subr.mxu0 0.0
    %823 = vmatpush1.msra.mxu0 0.0
    %824 = vmatprep.subr.mxu0 0.0
    %825 = vmatpush1.msra.mxu0 0.0
    %826 = vmatprep.subr.mxu0 0.0
    %827 = vmatpush1.msra.mxu0 0.0
    %828 = vmatprep.mubr.f32.mxu0 0.0
    %829 = vmatmul.mubr.f32.gmra.mrb[0].mxu0 %v762
    %v830 = vpop.f32.mrb[0].mxu0
    %v831 = vadd.f32 %v759, %v830
    %v832 = vpop.f32.mrb[0].mxu0
    %833 = vdwg.mxu0
    %v834 = vmax.f32 %v25, 1.0
    %v836 = vlaneseq
    %v837 = vshrl.u32 %v836, 7
    %v838 = vsub.s32 0, %v837
    %v839 = vrot.slane %v834, %v838
    %v841 = vrcp.pop %v839
    %v842 = vmul.f32 %v831, %v841
    %843 = vst [vmem:[#allocation2] sm:$0xff] %v842
    // Predicated region
    $region26: #{tpu_custom_call.1} parent=1 // pred_check
      _
    $region27: #{tpu_custom_call.1} parent=1 // pred_check_branch
      %845 = sbr.rel (0) target = $region29
    $region28: #{tpu_custom_call.1} parent=1 // pred_region
      %s847 = ssub.s32 128, 128
      %848 = vsyncadd [#allocation3], %s847
      %s850 = sshll.u32 [#allocation2], 4
      %s851 = int_to_ptr.vmem [resolvable:$true] %s850
      %853 = dma.vmem_to_hbm [thread:$0]  %s851, 128, %s6, [#allocation3]
    $region29: #{tpu_custom_call.1} parent=1 // pred_fallthru
      _
    // Predicated region
    $region30: #{tpu_custom_call.1} parent=1 // pred_check
      _
    $region31: #{tpu_custom_call.1} parent=1 // pred_check_branch
      %855 = sbr.rel (0) target = $region33
    $region32: #{tpu_custom_call.1} parent=1 // pred_region
      %856 = dma.done [#allocation3], 128
    $region33: #{tpu_custom_call.1} parent=1 // pred_fallthru
      _
    %857 = vsyncpa [#allocation3], 1

</llo_original>
